<compile_context>
chip_gen: v6e
topology: v6e:2x2x1
jax: 0.10.0
libtpu: 0.0.40
codegen_flags: <defaults>
</compile_context>

<pallas_src>
import jax
import jax.numpy as jnp
from jax.experimental import pallas as pl
from jax.experimental.pallas import tpu as pltpu


def _round_up(n, m):
    return ((n + m - 1) // m) * m


def discriminator_kernel(x_ref, w1_ref, b1_ref, w2_ref, b2_ref, out_ref):
    k = out_ref.shape[1]                                  # real num_classes

    # GRL.apply(x, alpha, max_iter) -> identity in the forward pass.
    x = x_ref[...].astype(jnp.bfloat16)                   # (TM, C); no-op if bf16 in

    # fc1: x @ W1^T  (weights pre-transposed to (in, out)); f32 accumulation.
    h = jnp.dot(x, w1_ref[...], preferred_element_type=jnp.float32)   # (TM, C)
    h = jnp.maximum(h + b1_ref[...], 0.0)                 # bias + ReLU in f32

    # Dropout(0.5): eval-mode identity.
    # TODO(synk): training-mode dropout mask via pltpu.prng_random_bits.

    # fc2 against the lane-padded (C, KP) weight; store only the real K columns
    # so HBM writeback carries no padding zeros.
    o = jnp.dot(h.astype(jnp.bfloat16), w2_ref[...],
                preferred_element_type=jnp.float32)       # (TM, KP)
    out_ref[...] = (o[:, :k] + b2_ref[...]).astype(out_ref.dtype)


def prepare_discriminator_params(w1, b1, w2, b2):
    """One-time parameter prep (hoisted out of the hot path).

    w1: (C, C) torch (out, in); b1: (C,); w2: (K, C) torch (out, in); b2: (K,).
    Returns (w1_t, b1_r, w2_t, b2_r) with weights in bf16 (in, out) layout and
    fc2 output channels zero-padded to a lane-aligned KP for the MXU.
    """
    C = w1.shape[1]
    K = w2.shape[0]
    KP = _round_up(max(K, 128), 128)
    w1_t = jnp.asarray(w1, jnp.bfloat16).T                              # (C, C)
    w2_t = jnp.zeros((C, KP), jnp.bfloat16).at[:, :K].set(
        jnp.asarray(w2, jnp.bfloat16).T)                                # (C, KP)
    b1_r = jnp.asarray(b1, jnp.float32).reshape(1, C)                   # (1, C)
    b2_r = jnp.asarray(b2, jnp.float32).reshape(1, K)                   # (1, K)
    return w1_t, b1_r, w2_t, b2_r


def discriminator_forward(x, params):
    """x: (B, C) f32 or bf16; params from prepare_discriminator_params()."""
    w1_t, b1_r, w2_t, b2_r = params
    B, C = x.shape
    KP = w2_t.shape[1]
    K = b2_r.shape[1]

    # Batch tiling: single block for small B; otherwise ~2048-row tiles with an
    # even number (>= 2) of grid steps so v7x's two TensorCores both get work
    # and the pipeline has something to overlap.
    if B <= 256:
        TM = B
    else:
        steps = 2 * pl.cdiv(pl.cdiv(B, 2048), 2)          # even, >= 2
        TM = min(2048, _round_up(pl.cdiv(B, steps), 8))
    grid = (pl.cdiv(B, TM),)                              # ragged tail is clipped

    # Single-buffer the grid-invariant weights only once they are big enough to
    # matter for VMEM budgets (v7x: 64 MiB physical; v5e: 16 MiB default scoped).
    single_buffer_weights = C >= 2048
    w_kw = dict(pipeline_mode=pl.Buffered(1)) if single_buffer_weights else {}
    wbuf = 1 if single_buffer_weights else 2

    itemsize = jnp.dtype(x.dtype).itemsize
    vmem_est = (2 * TM * C * itemsize                     # x blocks (double-buffered)
                + 2 * TM * K * itemsize                   # out blocks
                + wbuf * (C * C + C * KP) * 2             # bf16 weights
                + TM * C * 4 + TM * KP * 4                # f32 intermediates h, o
                + (C + K) * 4)                            # biases
    vmem_limit = int(min(100 * 2**20, max(32 * 2**20, 2 * vmem_est)))
    # TODO(synk): for C large enough that even single-buffered (C,C)+(C,KP) bf16
    # weights blow v7x's 64 MiB VMEM, add an "arbitrary" channel-tile grid axis
    # with a (TM, KP) f32 accumulator (pl.when init/finalize).

    return pl.pallas_call(
        discriminator_kernel,
        out_shape=jax.ShapeDtypeStruct((B, K), x.dtype),
        grid_spec=pl.GridSpec(
            grid=grid,
            in_specs=[
                pl.BlockSpec((TM, C), lambda i: (i, 0)),           # x batch tile
                pl.BlockSpec((C, C), lambda i: (0, 0), **w_kw),    # W1^T (resident)
                pl.BlockSpec((1, C), lambda i: (0, 0)),            # b1
                pl.BlockSpec((C, KP), lambda i: (0, 0), **w_kw),   # W2^T padded (resident)
                pl.BlockSpec((1, K), lambda i: (0, 0)),            # b2
            ],
            out_specs=pl.BlockSpec((TM, K), lambda i: (i, 0)),     # real K cols only
        ),
        compiler_params=pltpu.CompilerParams(
            dimension_semantics=("parallel",),
            vmem_limit_bytes=vmem_limit),
    )(x, w1_t, b1_r, w2_t, b2_r)


if __name__ == "__main__":
    # Small shapes consistent with the module: Linear(channels, channels),
    # Linear(channels, num_classes). channels=128 (lane-aligned), classes=4.
    B, C, K = 8, 128, 4

    key = jax.random.PRNGKey(0)
    k_x, k_w1, k_b1, k_w2, k_b2, k_x2 = jax.random.split(key, 6)

    x = jax.random.normal(k_x, (B, C), dtype=jnp.float32)

    # Synthetic parameters in PyTorch nn.Linear layout (out, in).
    w1 = jax.random.normal(k_w1, (C, C), dtype=jnp.float32) * 0.02
    b1 = jax.random.normal(k_b1, (C,), dtype=jnp.float32) * 0.01
    w2 = jax.random.normal(k_w2, (K, C), dtype=jnp.float32) * 0.02
    b2 = jax.random.normal(k_b2, (K,), dtype=jnp.float32) * 0.01

    # One-time weight prep (hoisted out of the per-call hot path).
    params = prepare_discriminator_params(w1, b1, w2, b2)

    def ref_f32(xv):  # full-f32 PyTorch-equivalent forward
        return jnp.maximum(xv @ w1.T + b1, 0.0) @ w2.T + b2

    def ref_bf16(xv):  # same bf16-matmul / f32-accumulate recipe as the kernel
        xb = xv.astype(jnp.bfloat16)
        h = jnp.maximum(
            jnp.dot(xb, w1.astype(jnp.bfloat16).T,
                    preferred_element_type=jnp.float32) + b1, 0.0)
        return jnp.dot(h.astype(jnp.bfloat16), w2.astype(jnp.bfloat16).T,
                       preferred_element_type=jnp.float32) + b2

    # Case 1: small batch, single-block grid.
    out = jax.block_until_ready(discriminator_forward(x, params))
    assert out.shape == (B, K)
    assert jnp.allclose(out, ref_bf16(x), atol=2e-3, rtol=2e-3)
    assert jnp.allclose(out, ref_f32(x), atol=2e-2, rtol=2e-2)

    # Case 2: multi-step grid with a ragged tail block (no wrapper pad).
    B2 = 300
    x2 = jax.random.normal(k_x2, (B2, C), dtype=jnp.float32)
    out2 = jax.block_until_ready(discriminator_forward(x2, params))
    assert out2.shape == (B2, K)
    assert jnp.allclose(out2, ref_bf16(x2), atol=2e-3, rtol=2e-3)

    print("KERNEL_OK")
</pallas_src>

<mosaic_0001>
module attributes {stable_mosaic.version = 11 : i64} {
  func.func @discriminator_kernel(%arg0: i32, %arg1: memref<8x128xf32, #tpu.memory_space<vmem>>, %arg2: memref<128x128xbf16, #tpu.memory_space<vmem>>, %arg3: memref<1x128xf32, #tpu.memory_space<vmem>>, %arg4: memref<128x128xbf16, #tpu.memory_space<vmem>>, %arg5: memref<1x4xf32, #tpu.memory_space<vmem>>, %arg6: memref<8x4xf32, #tpu.memory_space<vmem>>) attributes {dimension_semantics = [#tpu.dimension_semantics<parallel>], iteration_bounds = array<i64: 1>, scalar_prefetch = 0 : i64, scratch_operands = 0 : i64, tpu.core_type = #tpu.core_type<tc>, window_params = [{transform_indices = @transform_0, window_bounds = array<i64: 8, 128>}, {pipeline_mode = #tpu.pipeline_mode<synchronous>, transform_indices = @transform_1, window_bounds = array<i64: 128, 128>}, {pipeline_mode = #tpu.pipeline_mode<synchronous>, transform_indices = @transform_2, window_bounds = array<i64: 1, 128>}, {pipeline_mode = #tpu.pipeline_mode<synchronous>, transform_indices = @transform_3, window_bounds = array<i64: 128, 128>}, {pipeline_mode = #tpu.pipeline_mode<synchronous>, transform_indices = @transform_4, window_bounds = array<i64: 1, 4>}, {transform_indices = @transform_5, window_bounds = array<i64: 8, 4>}]} {
    %c0 = arith.constant 0 : index
    %c0_0 = arith.constant 0 : index
    %0 = vector.load %arg1[%c0, %c0_0] : memref<8x128xf32, #tpu.memory_space<vmem>>, vector<8x128xf32>
    %1 = arith.truncf %0 : vector<8x128xf32> to vector<8x128xbf16>
    %c0_1 = arith.constant 0 : index
    %c0_2 = arith.constant 0 : index
    %2 = vector.load %arg2[%c0_1, %c0_2] : memref<128x128xbf16, #tpu.memory_space<vmem>>, vector<128x128xbf16>
    %cst = arith.constant dense<0.000000e+00> : vector<8x128xf32>
    %3 = tpu.matmul %1, %2, %cst {dimension_numbers = #tpu.dot_dimension_numbers<[1], [0], [0], [1], [0, 0, 1, 1], [], []>} : vector<8x128xbf16>, vector<128x128xbf16>, vector<8x128xf32> -> vector<8x128xf32>
    %c0_3 = arith.constant 0 : index
    %c0_4 = arith.constant 0 : index
    %4 = vector.load %arg3[%c0_3, %c0_4] : memref<1x128xf32, #tpu.memory_space<vmem>>, vector<1x128xf32>
    %5 = vector.broadcast %4 : vector<1x128xf32> to vector<8x128xf32>
    %6 = arith.addf %3, %5 : vector<8x128xf32>
    %cst_5 = arith.constant 0.000000e+00 : f32
    %7 = vector.broadcast %cst_5 : f32 to vector<8x128xf32>
    %8 = arith.maximumf %6, %7 : vector<8x128xf32>
    %9 = arith.truncf %8 : vector<8x128xf32> to vector<8x128xbf16>
    %c0_6 = arith.constant 0 : index
    %c0_7 = arith.constant 0 : index
    %10 = vector.load %arg4[%c0_6, %c0_7] : memref<128x128xbf16, #tpu.memory_space<vmem>>, vector<128x128xbf16>
    %cst_8 = arith.constant dense<0.000000e+00> : vector<8x128xf32>
    %11 = tpu.matmul %9, %10, %cst_8 {dimension_numbers = #tpu.dot_dimension_numbers<[1], [0], [0], [1], [0, 0, 1, 1], [], []>} : vector<8x128xbf16>, vector<128x128xbf16>, vector<8x128xf32> -> vector<8x128xf32>
    %12 = vector.extract_strided_slice %11 {offsets = [0, 0], sizes = [8, 4], strides = [1, 1]} : vector<8x128xf32> to vector<8x4xf32>
    %c0_9 = arith.constant 0 : index
    %c0_10 = arith.constant 0 : index
    %13 = vector.load %arg5[%c0_9, %c0_10] : memref<1x4xf32, #tpu.memory_space<vmem>>, vector<1x4xf32>
    %14 = vector.broadcast %13 : vector<1x4xf32> to vector<8x4xf32>
    %15 = arith.addf %12, %14 : vector<8x4xf32>
    %c0_11 = arith.constant 0 : index
    %c0_12 = arith.constant 0 : index
    %16 = vector.load %arg6[%c0_11, %c0_12] : memref<8x4xf32, #tpu.memory_space<vmem>>, vector<8x4xf32>
    tpu.vector_store %arg6[%c0_11, %c0_12], %15 {strides = array<i32>} : memref<8x4xf32, #tpu.memory_space<vmem>>, vector<8x4xf32>,
    return
  }
  func.func @transform_0(%arg0: i32) -> (i32, i32) {
    %c0_i32 = arith.constant 0 : i32
    %c0_i32_0 = arith.constant 0 : i32
    return %arg0, %c0_i32 : i32, i32
  }
  func.func @transform_1(%arg0: i32) -> (i32, i32) {
    %c0_i32 = arith.constant 0 : i32
    %c0_i32_0 = arith.constant 0 : i32
    %c0_i32_1 = arith.constant 0 : i32
    return %c0_i32, %c0_i32_0 : i32, i32
  }
  func.func @transform_2(%arg0: i32) -> (i32, i32) {
    %c0_i32 = arith.constant 0 : i32
    %c0_i32_0 = arith.constant 0 : i32
    %c0_i32_1 = arith.constant 0 : i32
    return %c0_i32, %c0_i32_0 : i32, i32
  }
  func.func @transform_3(%arg0: i32) -> (i32, i32) {
    %c0_i32 = arith.constant 0 : i32
    %c0_i32_0 = arith.constant 0 : i32
    %c0_i32_1 = arith.constant 0 : i32
    return %c0_i32, %c0_i32_0 : i32, i32
  }
  func.func @transform_4(%arg0: i32) -> (i32, i32) {
    %c0_i32 = arith.constant 0 : i32
    %c0_i32_0 = arith.constant 0 : i32
    %c0_i32_1 = arith.constant 0 : i32
    return %c0_i32, %c0_i32_0 : i32, i32
  }
  func.func @transform_5(%arg0: i32) -> (i32, i32) {
    %c0_i32 = arith.constant 0 : i32
    %c0_i32_0 = arith.constant 0 : i32
    return %arg0, %c0_i32 : i32, i32
  }
}

</mosaic_0001>

<llo_original>
// kernel: tpu_custom_call.1
$region0: #{tpu_custom_call.1}
  #allocation0 [shape = 'u32[]', space=smem, size = 0x4, offset = 0x4, fixed_abs, tag = 'smem constant byte address 0x4 - core index']
  #allocation1 [shape = 'u32[144,128]{1,0:T(1,128)}', space=vmem, size = 0x12000, scoped, tag = 'internal scratch']
  %s0 = inlined_call_operand.hbm [shape: f32[8,128], index: 0, kind: input, shape index: {}]
  %s1 = inlined_call_operand.hbm [shape: bf16[128,128], index: 1, kind: input, shape index: {}]
  %s2 = inlined_call_operand.vmem [shape: f32[1,128], index: 2, kind: input, shape index: {}]
  %s3 = inlined_call_operand.hbm [shape: bf16[128,128], index: 3, kind: input, shape index: {}]
  %s4 = inlined_call_operand.vmem [shape: f32[1,4], index: 4, kind: input, shape index: {}]
  %s5 = inlined_call_operand.vmem [shape: f32[8,4], index: 5, kind: output, shape index: {}]
  %s6 = sld [smem:[#allocation0]]
  $region42: #{tpu_custom_call.1} parent=0
    _
  %s8 = ssub.s32 1, %s6
  %s9 = scalar_select 0, %s8, %s6
  $region1: #{tpu_custom_call.1} parent=0
    #allocation2 [shape = 'u8[4096]{0}', space=vmem, size = 0x1000, scoped, tag = 'input window, operand 0, single buffered']
    #allocation3 [shape = 's32[1]{0}', space=sflag, size = 0x4, scoped, tag = 'scoped memory for tpu_custom_call.1']
    #allocation4 [shape = 'u8[32768]{0}', space=vmem, size = 0x8000, scoped, tag = 'input window, operand 1, single buffered']
    #allocation5 [shape = 's32[1]{0}', space=sflag, size = 0x4, scoped, tag = 'scoped memory for tpu_custom_call.1']
    #allocation6 [shape = 'u8[32768]{0}', space=vmem, size = 0x8000, scoped, tag = 'input window, operand 3, single buffered']
    %10 = vsyncpa [#allocation3], 0
    %11 = vsyncpa [#allocation5], 0
    // Predicated region
    $region2: #{tpu_custom_call.1} parent=1 // pred_check
      _
    $region3: #{tpu_custom_call.1} parent=1 // pred_check_branch
      %13 = sbr.rel (0) target = $region5
    $region4: #{tpu_custom_call.1} parent=1 // pred_region
      %s15 = ssub.s32 128, 128
      %16 = vsyncadd [#allocation3], %s15
      %s18 = sshll.u32 [#allocation2], 4
      %s19 = int_to_ptr.vmem [resolvable:$true] %s18
      %21 = dma.hbm_to_vmem [thread:$0]  %s0, 128, %s19, [#allocation3]
    $region5: #{tpu_custom_call.1} parent=1 // pred_fallthru
      _
    // Predicated region
    $region6: #{tpu_custom_call.1} parent=1 // pred_check
      _
    $region7: #{tpu_custom_call.1} parent=1 // pred_check_branch
      %23 = sbr.rel (0) target = $region9
    $region8: #{tpu_custom_call.1} parent=1 // pred_region
      %s25 = ssub.s32 1024, 1024
      %26 = vsyncadd [#allocation5], %s25
      %s27 = sshll.u32 [#allocation4], 4
      %s28 = int_to_ptr.vmem [resolvable:$true] %s27
      %33 = dma.hbm_to_vmem [thread:$0]  %s1, 1024, %s28, [#allocation5], 64, 64, 4
    $region9: #{tpu_custom_call.1} parent=1 // pred_fallthru
      _
    // Predicated region
    $region10: #{tpu_custom_call.1} parent=1 // pred_check
      _
    $region11: #{tpu_custom_call.1} parent=1 // pred_check_branch
      %35 = sbr.rel (0) target = $region13
    $region12: #{tpu_custom_call.1} parent=1 // pred_region
      _
    $region13: #{tpu_custom_call.1} parent=1 // pred_fallthru
      _
    // Predicated region
    $region14: #{tpu_custom_call.1} parent=1 // pred_check
      _
    $region15: #{tpu_custom_call.1} parent=1 // pred_check_branch
      %37 = sbr.rel (0) target = $region17
    $region16: #{tpu_custom_call.1} parent=1 // pred_region
      %s39 = ssub.s32 1024, 1024
      %40 = vsyncadd [#allocation5], %s39
      %s41 = sshll.u32 [#allocation6], 4
      %s42 = int_to_ptr.vmem [resolvable:$true] %s41
      %47 = dma.hbm_to_vmem [thread:$0]  %s3, 1024, %s42, [#allocation5], 64, 64, 4
    $region17: #{tpu_custom_call.1} parent=1 // pred_fallthru
      _
    // Predicated region
    $region18: #{tpu_custom_call.1} parent=1 // pred_check
      _
    $region19: #{tpu_custom_call.1} parent=1 // pred_check_branch
      %49 = sbr.rel (0) target = $region21
    $region20: #{tpu_custom_call.1} parent=1 // pred_region
      _
    $region21: #{tpu_custom_call.1} parent=1 // pred_fallthru
      _
    // Predicated region
    $region22: #{tpu_custom_call.1} parent=1 // pred_check
      _
    $region23: #{tpu_custom_call.1} parent=1 // pred_check_branch
      %51 = sbr.rel (0) target = $region25
    $region24: #{tpu_custom_call.1} parent=1 // pred_region
      %52 = dma.done [#allocation3], 128
    $region25: #{tpu_custom_call.1} parent=1 // pred_fallthru
      _
    // Predicated region
    $region26: #{tpu_custom_call.1} parent=1 // pred_check
      _
    $region27: #{tpu_custom_call.1} parent=1 // pred_check_branch
      %54 = sbr.rel (0) target = $region29
    $region28: #{tpu_custom_call.1} parent=1 // pred_region
      %55 = dma.done [#allocation5], 1024
    $region29: #{tpu_custom_call.1} parent=1 // pred_fallthru
      _
    // Predicated region
    $region30: #{tpu_custom_call.1} parent=1 // pred_check
      _
    $region31: #{tpu_custom_call.1} parent=1 // pred_check_branch
      %57 = sbr.rel (0) target = $region33
    $region32: #{tpu_custom_call.1} parent=1 // pred_region
      %58 = dma.done [#allocation5], 1024
    $region33: #{tpu_custom_call.1} parent=1 // pred_fallthru
      _
    %v60 = vld [vmem:[#allocation2] sm:$0xff]
    %v61 = vpack.c.bf16 %v60, %v60
    %v62 = vld [vmem:[#allocation4] sm:$0xf]
    %v63 = vld [vmem:[#allocation4 + $0x4] sm:$0xf]
    %v64 = vld [vmem:[#allocation4 + $0x8] sm:$0xf]
    %v65 = vld [vmem:[#allocation4 + $0xc] sm:$0xf]
    %v66 = vld [vmem:[#allocation4 + $0x10] sm:$0xf]
    %v67 = vld [vmem:[#allocation4 + $0x14] sm:$0xf]
    %v68 = vld [vmem:[#allocation4 + $0x18] sm:$0xf]
    %v69 = vld [vmem:[#allocation4 + $0x1c] sm:$0xf]
    %v70 = vld [vmem:[#allocation4 + $0x20] sm:$0xf]
    %v71 = vld [vmem:[#allocation4 + $0x24] sm:$0xf]
    %v72 = vld [vmem:[#allocation4 + $0x28] sm:$0xf]
    %v73 = vld [vmem:[#allocation4 + $0x2c] sm:$0xf]
    %v74 = vld [vmem:[#allocation4 + $0x30] sm:$0xf]
    %v75 = vld [vmem:[#allocation4 + $0x34] sm:$0xf]
    %v76 = vld [vmem:[#allocation4 + $0x38] sm:$0xf]
    %v77 = vld [vmem:[#allocation4 + $0x3c] sm:$0xf]
    %v78 = vld [vmem:[%s2] sm:$0x1]
    %v80 = vlaneseq
    %v81 = vshrl.u32 %v80, 7
    %v82 = vsub.s32 0, %v81
    %v83 = vrot.slane %v78, %v82
    %v101 = vunpack.c.l.b16 %v62
    %v102 = vunpack.c.l.b16 %v63
    %v103 = vunpack.c.l.b16 %v64
    %v104 = vunpack.c.l.b16 %v65
    %v105 = vunpack.c.l.b16 %v66
    %v106 = vunpack.c.l.b16 %v67
    %v107 = vunpack.c.l.b16 %v68
    %v108 = vunpack.c.l.b16 %v69
    %v109 = vunpack.c.l.b16 %v70
    %v110 = vunpack.c.l.b16 %v71
    %v111 = vunpack.c.l.b16 %v72
    %v112 = vunpack.c.l.b16 %v73
    %v113 = vunpack.c.l.b16 %v74
    %v114 = vunpack.c.l.b16 %v75
    %v115 = vunpack.c.l.b16 %v76
    %v116 = vunpack.c.l.b16 %v77
    %v117 = vpack.c.b16 %v102, %v101
    %v118 = vpack.c.b16 %v104, %v103
    %v119 = vpack.c.b16 %v106, %v105
    %v120 = vpack.c.b16 %v108, %v107
    %v121 = vpack.c.b16 %v110, %v109
    %v122 = vpack.c.b16 %v112, %v111
    %v123 = vpack.c.b16 %v114, %v113
    %v124 = vpack.c.b16 %v116, %v115
    %133 = vmatprep.subr.bf16.mxu0 0
    %134 = vmatpush1.bf16.msra.mxu0 %v124
    %135 = vmatprep.subr.bf16.mxu0 0
    %136 = vmatpush1.bf16.msra.mxu0 %v123
    %137 = vmatprep.subr.bf16.mxu0 0
    %138 = vmatpush1.bf16.msra.mxu0 %v122
    %139 = vmatprep.subr.bf16.mxu0 0
    %140 = vmatpush1.bf16.msra.mxu0 %v121
    %141 = vmatprep.subr.bf16.mxu0 0
    %142 = vmatpush1.bf16.msra.mxu0 %v120
    %143 = vmatprep.subr.bf16.mxu0 0
    %144 = vmatpush1.bf16.msra.mxu0 %v119
    %145 = vmatprep.subr.bf16.mxu0 0
    %146 = vmatpush1.bf16.msra.mxu0 %v118
    %147 = vmatprep.subr.bf16.mxu0 0
    %148 = vmatpush1.bf16.msra.mxu0 %v117
    %149 = vmatprep.subr.bf16.mxu0 0
    %150 = vmatpush2.bf16.msra.mxu0 0
    %151 = vmatprep.subr.bf16.mxu0 0
    %152 = vmatpush2.bf16.msra.mxu0 0
    %153 = vmatprep.subr.bf16.mxu0 0
    %154 = vmatpush2.bf16.msra.mxu0 0
    %155 = vmatprep.subr.bf16.mxu0 0
    %156 = vmatpush2.bf16.msra.mxu0 0
    %157 = vmatprep.subr.bf16.mxu0 0
    %158 = vmatpush2.bf16.msra.mxu0 0
    %159 = vmatprep.subr.bf16.mxu0 0
    %160 = vmatpush2.bf16.msra.mxu0 0
    %161 = vmatprep.subr.bf16.mxu0 0
    %162 = vmatpush2.bf16.msra.mxu0 0
    %163 = vmatprep.subr.bf16.mxu0 0
    %164 = vmatpush2.bf16.msra.mxu0 0
    %165 = vmatprep.mubr.bf16.mxu0 0
    %166 = vmatmul.mubr.bf16.gmra.mxu0 %v61
    %v167 = vpop.f32.mrf.mxu0
    %v168 = vadd.f32 %v83, %v167
    %v169 = vpop.f32.mrf.mxu0
    %v170 = vpop.f32.mrf.mxu0
    %v171 = vpop.f32.mrf.mxu0
    %172 = vdwg.mxu0
    %v173 = vmax.f32 %v168, 0.0
    %v174 = vpack.c.bf16 %v173, %v173
    %v175 = vld [vmem:[#allocation6] sm:$0xf]
    %v176 = vld [vmem:[#allocation6 + $0x4] sm:$0xf]
    %v177 = vld [vmem:[#allocation6 + $0x8] sm:$0xf]
    %v178 = vld [vmem:[#allocation6 + $0xc] sm:$0xf]
    %v179 = vld [vmem:[#allocation6 + $0x10] sm:$0xf]
    %v180 = vld [vmem:[#allocation6 + $0x14] sm:$0xf]
    %v181 = vld [vmem:[#allocation6 + $0x18] sm:$0xf]
    %v182 = vld [vmem:[#allocation6 + $0x1c] sm:$0xf]
    %v183 = vld [vmem:[#allocation6 + $0x20] sm:$0xf]
    %v184 = vld [vmem:[#allocation6 + $0x24] sm:$0xf]
    %v185 = vld [vmem:[#allocation6 + $0x28] sm:$0xf]
    %v186 = vld [vmem:[#allocation6 + $0x2c] sm:$0xf]
    %v187 = vld [vmem:[#allocation6 + $0x30] sm:$0xf]
    %v188 = vld [vmem:[#allocation6 + $0x34] sm:$0xf]
    %v189 = vld [vmem:[#allocation6 + $0x38] sm:$0xf]
    %v190 = vld [vmem:[#allocation6 + $0x3c] sm:$0xf]
    %v207 = vunpack.c.l.b16 %v175
    %v208 = vunpack.c.l.b16 %v176
    %v209 = vunpack.c.l.b16 %v177
    %v210 = vunpack.c.l.b16 %v178
    %v211 = vunpack.c.l.b16 %v179
    %v212 = vunpack.c.l.b16 %v180
    %v213 = vunpack.c.l.b16 %v181
    %v214 = vunpack.c.l.b16 %v182
    %v215 = vunpack.c.l.b16 %v183
    %v216 = vunpack.c.l.b16 %v184
    %v217 = vunpack.c.l.b16 %v185
    %v218 = vunpack.c.l.b16 %v186
    %v219 = vunpack.c.l.b16 %v187
    %v220 = vunpack.c.l.b16 %v188
    %v221 = vunpack.c.l.b16 %v189
    %v222 = vunpack.c.l.b16 %v190
    %v223 = vpack.c.b16 %v208, %v207
    %v224 = vpack.c.b16 %v210, %v209
    %v225 = vpack.c.b16 %v212, %v211
    %v226 = vpack.c.b16 %v214, %v213
    %v227 = vpack.c.b16 %v216, %v215
    %v228 = vpack.c.b16 %v218, %v217
    %v229 = vpack.c.b16 %v220, %v219
    %v230 = vpack.c.b16 %v222, %v221
    %239 = vmatprep.subr.bf16.mxu0 0
    %240 = vmatpush1.bf16.msra.mxu0 %v230
    %241 = vmatprep.subr.bf16.mxu0 0
    %242 = vmatpush1.bf16.msra.mxu0 %v229
    %243 = vmatprep.subr.bf16.mxu0 0
    %244 = vmatpush1.bf16.msra.mxu0 %v228
    %245 = vmatprep.subr.bf16.mxu0 0
    %246 = vmatpush1.bf16.msra.mxu0 %v227
    %247 = vmatprep.subr.bf16.mxu0 0
    %248 = vmatpush1.bf16.msra.mxu0 %v226
    %249 = vmatprep.subr.bf16.mxu0 0
    %250 = vmatpush1.bf16.msra.mxu0 %v225
    %251 = vmatprep.subr.bf16.mxu0 0
    %252 = vmatpush1.bf16.msra.mxu0 %v224
    %253 = vmatprep.subr.bf16.mxu0 0
    %254 = vmatpush1.bf16.msra.mxu0 %v223
    %255 = vmatprep.subr.bf16.mxu0 0
    %256 = vmatpush2.bf16.msra.mxu0 0
    %257 = vmatprep.subr.bf16.mxu0 0
    %258 = vmatpush2.bf16.msra.mxu0 0
    %259 = vmatprep.subr.bf16.mxu0 0
    %260 = vmatpush2.bf16.msra.mxu0 0
    %261 = vmatprep.subr.bf16.mxu0 0
    %262 = vmatpush2.bf16.msra.mxu0 0
    %263 = vmatprep.subr.bf16.mxu0 0
    %264 = vmatpush2.bf16.msra.mxu0 0
    %265 = vmatprep.subr.bf16.mxu0 0
    %266 = vmatpush2.bf16.msra.mxu0 0
    %267 = vmatprep.subr.bf16.mxu0 0
    %268 = vmatpush2.bf16.msra.mxu0 0
    %269 = vmatprep.subr.bf16.mxu0 0
    %270 = vmatpush2.bf16.msra.mxu0 0
    %271 = vmatprep.mubr.bf16.mxu0 0
    %272 = vmatmul.mubr.bf16.gmra.mxu0 %v174
    %v273 = vpop.f32.mrf.mxu0
    %v274 = vadd.f32 0.0, %v273
    %v275 = vpop.f32.mrf.mxu0
    %v276 = vpop.f32.mrf.mxu0
    %v277 = vpop.f32.mrf.mxu0
    %278 = vdwg.mxu0
    %v279 = vld [vmem:[%s4] sm:$0x1]
    %v281 = vlaneseq
    %v282 = vshrl.u32 %v281, 7
    %v283 = vsub.s32 0, %v282
    %v284 = vrot.slane %v279, %v283
    %v286 = vadd.f32 %v274, %v284
    %vm287 = vcmask 31744
    %288 = vst.msk [vmem:[%s5] sm:$0xff] %vm287, %v286
    // Predicated region
    $region34: #{tpu_custom_call.1} parent=1 // pred_check
      _
    $region35: #{tpu_custom_call.1} parent=1 // pred_check_branch
      %290 = sbr.rel (0) target = $region37
    $region36: #{tpu_custom_call.1} parent=1 // pred_region
      _
    $region37: #{tpu_custom_call.1} parent=1 // pred_fallthru
      _
    // Predicated region
    $region38: #{tpu_custom_call.1} parent=1 // pred_check
      _
    $region39: #{tpu_custom_call.1} parent=1 // pred_check_branch
      %292 = sbr.rel (0) target = $region41
    $region40: #{tpu_custom_call.1} parent=1 // pred_region
      _
    $region41: #{tpu_custom_call.1} parent=1 // pred_fallthru
      _
    %293 = vsyncpa [#allocation3], 1
    %294 = vsyncpa [#allocation5], 1

</llo_original>
